<compile_context>
chip_gen: v5e
topology: v5e:2x2
jax: 0.10.0
libtpu: 0.0.40
codegen_flags: <defaults>
</compile_context>

<pallas_src>
import functools

import jax
import jax.numpy as jnp
from jax.experimental import pallas as pl
from jax.experimental.pallas import tpu as pltpu

INPUT_SIZE = 256
HIDDEN = 32
NUM_CLASSES = 2


# ---------------------------------------------------------------------------
# Fused kernel: fc1 + ReLU + (precomputed gate inputs) + LSTM scan + fc3
# ---------------------------------------------------------------------------
def fused_kernel(x_ref, w1_ref, b1_ref, wih_ref, whh_ref, bg_ref, w3_ref, b3_ref,
                 y_ref, gx_ref, *, bs, fr):
    # x_ref : (fr*bs, IN)  frame-major rows      w1_ref : (H, IN)     b1_ref: (1, H)
    # wih_ref: (4H, H)     whh_ref: (4H, H)      bg_ref : (1, 4H) = bih + bhh
    # w3_ref : (C, H)      b3_ref : (1, C)       y_ref  : (bs, C)
    # gx_ref : (fr*bs, 4H) VMEM scratch holding the per-frame gate inputs.
    H = HIDDEN

    # ---- Off-chain precompute: one matmul each, covering every frame at once ----
    # fc1 + ReLU for all (frame, batch) rows: (fr*bs, IN) x (H, IN)^T -> (fr*bs, H)
    a_all = jax.lax.dot_general(
        x_ref[...], w1_ref[...], (((1,), (1,)), ((), ())),
        preferred_element_type=jnp.float32) + b1_ref[...]
    a_all = jnp.maximum(a_all, 0.0)
    # TODO(synk): nn.Dropout in train mode is stochastic (PyTorch RNG stream can't be
    # reproduced); eval-mode identity semantics are implemented here.

    # Input contribution to all gates, all frames: (fr*bs, H) x (4H, H)^T -> (fr*bs, 4H)
    gx_ref[...] = jax.lax.dot_general(
        a_all, wih_ref[...], (((1,), (1,)), ((), ())),
        preferred_element_type=jnp.float32) + bg_ref[...]

    whh = whh_ref[...]
    h = jnp.zeros((bs, H), jnp.float32)
    c = jnp.zeros((bs, H), jnp.float32)

    # Fully-unrolled time loop (fr is static and small). Per step, only one tiny
    # recurrent matmul + two whole-vreg EUP pushes + a handful of VPU ops remain on
    # the serial h/c chain, all in lane-dense batch-major layout.
    for t in range(fr):
        gx_t = gx_ref[t * bs:(t + 1) * bs, :]                     # (bs, 4H) row load
        gates = jax.lax.dot_general(
            h, whh, (((1,), (1,)), ((), ())),
            preferred_element_type=jnp.float32) + gx_t            # (bs, 4H) = 1 vreg

        sg = jax.nn.sigmoid(gates)       # whole-vreg EUP push (i, f, o live here)
        tg = jnp.tanh(gates)             # whole-vreg EUP push (g lives here)
        # PyTorch gate order i, f, g, o; static 32-lane slices (XLU rotates).
        i = sg[:, 0 * H:1 * H]
        f = sg[:, 1 * H:2 * H]
        g = tg[:, 2 * H:3 * H]
        o = sg[:, 3 * H:4 * H]

        c = f * c + i * g
        h = o * jnp.tanh(c)

    # fc3 on the last frame's hidden state: contract over H directly, no transpose.
    y_ref[...] = jax.lax.dot_general(
        h, w3_ref[...], (((1,), (1,)), ((), ())),
        preferred_element_type=jnp.float32) + b3_ref[...]


# ---------------------------------------------------------------------------
# Wrapper
# ---------------------------------------------------------------------------
def prepare_params(params):
    """One-time parameter re-layout. Call OUTSIDE the jitted forward path."""
    w1, b1, wih, whh, bih, bhh, w3, b3 = params
    return (
        w1,                                       # (H, IN)    fc1.weight (as-is)
        b1.reshape(1, HIDDEN),                    # (1, H)
        wih,                                      # (4H, H)    lstm.weight_ih_l0
        whh,                                      # (4H, H)    lstm.weight_hh_l0
        (bih + bhh).reshape(1, 4 * HIDDEN),       # (1, 4H)    summed LSTM gate bias
        w3,                                       # (C, H)     fc3.weight (as-is)
        b3.reshape(1, NUM_CLASSES),               # (1, C)
    )


@jax.jit
def u_t_train_forward(x, prepared):
    assert x.ndim == 3, "data shape is incorrect."
    bs, fr, hs = x.shape
    assert hs == INPUT_SIZE, f"expected input_size={INPUT_SIZE}, got {hs}"
    assert fr >= 1, "need at least one frame"
    w1, b1, wih, whh, bg, w3, b3 = prepared

    # Frame-major row layout so frame t occupies contiguous rows [t*bs, (t+1)*bs) of
    # the precomputed gate-input scratch (tiny XLA transpose, outside the kernel).
    x_tm = jnp.transpose(x, (1, 0, 2)).reshape(fr * bs, INPUT_SIZE)

    vmem = pl.BlockSpec(memory_space=pltpu.MemorySpace.VMEM)
    kernel = functools.partial(fused_kernel, bs=bs, fr=fr)
    return pl.pallas_call(
        kernel,
        out_shape=jax.ShapeDtypeStruct((bs, NUM_CLASSES), jnp.float32),
        in_specs=[vmem] * 8,
        out_specs=vmem,
        scratch_shapes=[pltpu.VMEM((fr * bs, 4 * HIDDEN), jnp.float32)],
    )(x_tm, w1, b1, wih, whh, bg, w3, b3)


# ---------------------------------------------------------------------------
# Pure-JAX reference for correctness check
# ---------------------------------------------------------------------------
def reference_forward(x, params):
    w1, b1, wih, whh, bih, bhh, w3, b3 = params
    bs, fr, hs = x.shape
    h1 = jnp.maximum(x.reshape(-1, hs) @ w1.T + b1, 0.0).reshape(bs, fr, -1)
    h = jnp.zeros((bs, HIDDEN), jnp.float32)
    c = jnp.zeros((bs, HIDDEN), jnp.float32)
    for t in range(fr):
        gates = h1[:, t, :] @ wih.T + h @ whh.T + bih + bhh
        i, f, g, o = jnp.split(gates, 4, axis=-1)
        i, f, g, o = jax.nn.sigmoid(i), jax.nn.sigmoid(f), jnp.tanh(g), jax.nn.sigmoid(o)
        c = f * c + i * g
        h = o * jnp.tanh(c)
    return h @ w3.T + b3


# ---------------------------------------------------------------------------
def init_params(key):
    ks = jax.random.split(key, 8)

    def unif(k, shape, fan_in):
        bound = 1.0 / jnp.sqrt(fan_in)
        return jax.random.uniform(k, shape, jnp.float32, -bound, bound)

    w1 = unif(ks[0], (HIDDEN, INPUT_SIZE), INPUT_SIZE)     # fc1.weight
    b1 = unif(ks[1], (HIDDEN,), INPUT_SIZE)                # fc1.bias
    wih = unif(ks[2], (4 * HIDDEN, HIDDEN), HIDDEN)        # lstm.weight_ih_l0
    whh = unif(ks[3], (4 * HIDDEN, HIDDEN), HIDDEN)        # lstm.weight_hh_l0
    bih = unif(ks[4], (4 * HIDDEN,), HIDDEN)               # lstm.bias_ih_l0
    bhh = unif(ks[5], (4 * HIDDEN,), HIDDEN)               # lstm.bias_hh_l0
    w3 = unif(ks[6], (NUM_CLASSES, HIDDEN), HIDDEN)        # fc3.weight
    b3 = unif(ks[7], (NUM_CLASSES,), HIDDEN)               # fc3.bias
    return (w1, b1, wih, whh, bih, bhh, w3, b3)


if __name__ == "__main__":
    key = jax.random.PRNGKey(0)
    k_param, k_x = jax.random.split(key)

    bs, fr = 2, 8
    params = init_params(k_param)
    prepared = prepare_params(params)   # one-time layout prep, outside jit
    x = jax.random.normal(k_x, (bs, fr, INPUT_SIZE), jnp.float32)

    y = u_t_train_forward(x, prepared)
    y = jax.block_until_ready(y)

    y_ref = reference_forward(x, params)
    assert y.shape == (bs, NUM_CLASSES)
    assert jnp.allclose(y, y_ref, atol=1e-5, rtol=1e-5), (y, y_ref)

    print("KERNEL_OK")
</pallas_src>

<mosaic_0001>
module attributes {stable_mosaic.version = 11 : i64} {
  func.func @fused_kernel(%arg0: memref<16x256xf32, #tpu.memory_space<vmem>>, %arg1: memref<32x256xf32, #tpu.memory_space<vmem>>, %arg2: memref<1x32xf32, #tpu.memory_space<vmem>>, %arg3: memref<128x32xf32, #tpu.memory_space<vmem>>, %arg4: memref<128x32xf32, #tpu.memory_space<vmem>>, %arg5: memref<1x128xf32, #tpu.memory_space<vmem>>, %arg6: memref<2x32xf32, #tpu.memory_space<vmem>>, %arg7: memref<1x2xf32, #tpu.memory_space<vmem>>, %arg8: memref<2x2xf32, #tpu.memory_space<vmem>>, %arg9: memref<16x128xf32, #tpu.memory_space<vmem>>) attributes {dimension_semantics = [], scalar_prefetch = 0 : i64, scratch_operands = 1 : i64, tpu.core_type = #tpu.core_type<tc>} {
    %c0 = arith.constant 0 : index
    %c0_0 = arith.constant 0 : index
    %0 = vector.load %arg0[%c0, %c0_0] : memref<16x256xf32, #tpu.memory_space<vmem>>, vector<16x256xf32>
    %c0_1 = arith.constant 0 : index
    %c0_2 = arith.constant 0 : index
    %1 = vector.load %arg1[%c0_1, %c0_2] : memref<32x256xf32, #tpu.memory_space<vmem>>, vector<32x256xf32>
    %cst = arith.constant dense<0.000000e+00> : vector<16x32xf32>
    %2 = tpu.matmul %0, %1, %cst {dimension_numbers = #tpu.dot_dimension_numbers<[1], [1], [0], [0], [0, 0, 1, 0], [], []>} : vector<16x256xf32>, vector<32x256xf32>, vector<16x32xf32> -> vector<16x32xf32>
    %c0_3 = arith.constant 0 : index
    %c0_4 = arith.constant 0 : index
    %3 = vector.load %arg2[%c0_3, %c0_4] : memref<1x32xf32, #tpu.memory_space<vmem>>, vector<1x32xf32>
    %4 = vector.broadcast %3 : vector<1x32xf32> to vector<16x32xf32>
    %5 = arith.addf %2, %4 : vector<16x32xf32>
    %cst_5 = arith.constant 0.000000e+00 : f32
    %6 = vector.broadcast %cst_5 : f32 to vector<16x32xf32>
    %7 = arith.maximumf %5, %6 : vector<16x32xf32>
    %c0_6 = arith.constant 0 : index
    %c0_7 = arith.constant 0 : index
    %8 = vector.load %arg3[%c0_6, %c0_7] : memref<128x32xf32, #tpu.memory_space<vmem>>, vector<128x32xf32>
    %cst_8 = arith.constant dense<0.000000e+00> : vector<16x128xf32>
    %9 = tpu.matmul %7, %8, %cst_8 {dimension_numbers = #tpu.dot_dimension_numbers<[1], [1], [0], [0], [0, 0, 1, 0], [], []>} : vector<16x32xf32>, vector<128x32xf32>, vector<16x128xf32> -> vector<16x128xf32>
    %c0_9 = arith.constant 0 : index
    %c0_10 = arith.constant 0 : index
    %10 = vector.load %arg5[%c0_9, %c0_10] : memref<1x128xf32, #tpu.memory_space<vmem>>, vector<1x128xf32>
    %11 = vector.broadcast %10 : vector<1x128xf32> to vector<16x128xf32>
    %12 = arith.addf %9, %11 : vector<16x128xf32>
    %c0_11 = arith.constant 0 : index
    %c0_12 = arith.constant 0 : index
    %13 = vector.load %arg9[%c0_11, %c0_12] : memref<16x128xf32, #tpu.memory_space<vmem>>, vector<16x128xf32>
    tpu.vector_store %arg9[%c0_11, %c0_12], %12 {strides = array<i32>} : memref<16x128xf32, #tpu.memory_space<vmem>>, vector<16x128xf32>,
    %c0_13 = arith.constant 0 : index
    %c0_14 = arith.constant 0 : index
    %14 = vector.load %arg4[%c0_13, %c0_14] : memref<128x32xf32, #tpu.memory_space<vmem>>, vector<128x32xf32>
    %cst_15 = arith.constant 0.000000e+00 : f32
    %15 = vector.broadcast %cst_15 : f32 to vector<2x32xf32>
    %cst_16 = arith.constant 0.000000e+00 : f32
    %16 = vector.broadcast %cst_16 : f32 to vector<2x32xf32>
    %c0_17 = arith.constant 0 : index
    %c0_18 = arith.constant 0 : index
    %17 = vector.load %arg9[%c0_17, %c0_18] : memref<16x128xf32, #tpu.memory_space<vmem>>, vector<2x128xf32>
    %cst_19 = arith.constant dense<0.000000e+00> : vector<2x128xf32>
    %18 = tpu.matmul %15, %14, %cst_19 {dimension_numbers = #tpu.dot_dimension_numbers<[1], [1], [0], [0], [0, 0, 1, 0], [], []>} : vector<2x32xf32>, vector<128x32xf32>, vector<2x128xf32> -> vector<2x128xf32>
    %19 = arith.addf %18, %17 : vector<2x128xf32>
    %20 = arith.negf %19 : vector<2x128xf32>
    %21 = math.exp %20 : vector<2x128xf32>
    %cst_20 = arith.constant 1.000000e+00 : f32
    %22 = vector.broadcast %cst_20 : f32 to vector<2x128xf32>
    %23 = arith.addf %22, %21 : vector<2x128xf32>
    %24 = arith.divf %22, %23 : vector<2x128xf32>
    %25 = math.tanh %19 : vector<2x128xf32>
    %26 = vector.extract_strided_slice %24 {offsets = [0, 0], sizes = [2, 32], strides = [1, 1]} : vector<2x128xf32> to vector<2x32xf32>
    %27 = vector.extract_strided_slice %24 {offsets = [0, 32], sizes = [2, 32], strides = [1, 1]} : vector<2x128xf32> to vector<2x32xf32>
    %28 = vector.extract_strided_slice %25 {offsets = [0, 64], sizes = [2, 32], strides = [1, 1]} : vector<2x128xf32> to vector<2x32xf32>
    %29 = vector.extract_strided_slice %24 {offsets = [0, 96], sizes = [2, 32], strides = [1, 1]} : vector<2x128xf32> to vector<2x32xf32>
    %30 = arith.mulf %27, %16 : vector<2x32xf32>
    %31 = arith.mulf %26, %28 : vector<2x32xf32>
    %32 = arith.addf %30, %31 : vector<2x32xf32>
    %33 = math.tanh %32 : vector<2x32xf32>
    %34 = arith.mulf %29, %33 : vector<2x32xf32>
    %c2 = arith.constant 2 : index
    %c0_21 = arith.constant 0 : index
    %35 = vector.load %arg9[%c2, %c0_21] : memref<16x128xf32, #tpu.memory_space<vmem>>, vector<2x128xf32>
    %cst_22 = arith.constant dense<0.000000e+00> : vector<2x128xf32>
    %36 = tpu.matmul %34, %14, %cst_22 {dimension_numbers = #tpu.dot_dimension_numbers<[1], [1], [0], [0], [0, 0, 1, 0], [], []>} : vector<2x32xf32>, vector<128x32xf32>, vector<2x128xf32> -> vector<2x128xf32>
    %37 = arith.addf %36, %35 : vector<2x128xf32>
    %38 = arith.negf %37 : vector<2x128xf32>
    %39 = math.exp %38 : vector<2x128xf32>
    %cst_23 = arith.constant 1.000000e+00 : f32
    %40 = vector.broadcast %cst_23 : f32 to vector<2x128xf32>
    %41 = arith.addf %40, %39 : vector<2x128xf32>
    %42 = arith.divf %40, %41 : vector<2x128xf32>
    %43 = math.tanh %37 : vector<2x128xf32>
    %44 = vector.extract_strided_slice %42 {offsets = [0, 0], sizes = [2, 32], strides = [1, 1]} : vector<2x128xf32> to vector<2x32xf32>
    %45 = vector.extract_strided_slice %42 {offsets = [0, 32], sizes = [2, 32], strides = [1, 1]} : vector<2x128xf32> to vector<2x32xf32>
    %46 = vector.extract_strided_slice %43 {offsets = [0, 64], sizes = [2, 32], strides = [1, 1]} : vector<2x128xf32> to vector<2x32xf32>
    %47 = vector.extract_strided_slice %42 {offsets = [0, 96], sizes = [2, 32], strides = [1, 1]} : vector<2x128xf32> to vector<2x32xf32>
    %48 = arith.mulf %45, %32 : vector<2x32xf32>
    %49 = arith.mulf %44, %46 : vector<2x32xf32>
    %50 = arith.addf %48, %49 : vector<2x32xf32>
    %51 = math.tanh %50 : vector<2x32xf32>
    %52 = arith.mulf %47, %51 : vector<2x32xf32>
    %c4 = arith.constant 4 : index
    %c0_24 = arith.constant 0 : index
    %53 = vector.load %arg9[%c4, %c0_24] : memref<16x128xf32, #tpu.memory_space<vmem>>, vector<2x128xf32>
    %cst_25 = arith.constant dense<0.000000e+00> : vector<2x128xf32>
    %54 = tpu.matmul %52, %14, %cst_25 {dimension_numbers = #tpu.dot_dimension_numbers<[1], [1], [0], [0], [0, 0, 1, 0], [], []>} : vector<2x32xf32>, vector<128x32xf32>, vector<2x128xf32> -> vector<2x128xf32>
    %55 = arith.addf %54, %53 : vector<2x128xf32>
    %56 = arith.negf %55 : vector<2x128xf32>
    %57 = math.exp %56 : vector<2x128xf32>
    %cst_26 = arith.constant 1.000000e+00 : f32
    %58 = vector.broadcast %cst_26 : f32 to vector<2x128xf32>
    %59 = arith.addf %58, %57 : vector<2x128xf32>
    %60 = arith.divf %58, %59 : vector<2x128xf32>
    %61 = math.tanh %55 : vector<2x128xf32>
    %62 = vector.extract_strided_slice %60 {offsets = [0, 0], sizes = [2, 32], strides = [1, 1]} : vector<2x128xf32> to vector<2x32xf32>
    %63 = vector.extract_strided_slice %60 {offsets = [0, 32], sizes = [2, 32], strides = [1, 1]} : vector<2x128xf32> to vector<2x32xf32>
    %64 = vector.extract_strided_slice %61 {offsets = [0, 64], sizes = [2, 32], strides = [1, 1]} : vector<2x128xf32> to vector<2x32xf32>
    %65 = vector.extract_strided_slice %60 {offsets = [0, 96], sizes = [2, 32], strides = [1, 1]} : vector<2x128xf32> to vector<2x32xf32>
    %66 = arith.mulf %63, %50 : vector<2x32xf32>
    %67 = arith.mulf %62, %64 : vector<2x32xf32>
    %68 = arith.addf %66, %67 : vector<2x32xf32>
    %69 = math.tanh %68 : vector<2x32xf32>
    %70 = arith.mulf %65, %69 : vector<2x32xf32>
    %c6 = arith.constant 6 : index
    %c0_27 = arith.constant 0 : index
    %71 = vector.load %arg9[%c6, %c0_27] : memref<16x128xf32, #tpu.memory_space<vmem>>, vector<2x128xf32>
    %cst_28 = arith.constant dense<0.000000e+00> : vector<2x128xf32>
    %72 = tpu.matmul %70, %14, %cst_28 {dimension_numbers = #tpu.dot_dimension_numbers<[1], [1], [0], [0], [0, 0, 1, 0], [], []>} : vector<2x32xf32>, vector<128x32xf32>, vector<2x128xf32> -> vector<2x128xf32>
    %73 = arith.addf %72, %71 : vector<2x128xf32>
    %74 = arith.negf %73 : vector<2x128xf32>
    %75 = math.exp %74 : vector<2x128xf32>
    %cst_29 = arith.constant 1.000000e+00 : f32
    %76 = vector.broadcast %cst_29 : f32 to vector<2x128xf32>
    %77 = arith.addf %76, %75 : vector<2x128xf32>
    %78 = arith.divf %76, %77 : vector<2x128xf32>
    %79 = math.tanh %73 : vector<2x128xf32>
    %80 = vector.extract_strided_slice %78 {offsets = [0, 0], sizes = [2, 32], strides = [1, 1]} : vector<2x128xf32> to vector<2x32xf32>
    %81 = vector.extract_strided_slice %78 {offsets = [0, 32], sizes = [2, 32], strides = [1, 1]} : vector<2x128xf32> to vector<2x32xf32>
    %82 = vector.extract_strided_slice %79 {offsets = [0, 64], sizes = [2, 32], strides = [1, 1]} : vector<2x128xf32> to vector<2x32xf32>
    %83 = vector.extract_strided_slice %78 {offsets = [0, 96], sizes = [2, 32], strides = [1, 1]} : vector<2x128xf32> to vector<2x32xf32>
    %84 = arith.mulf %81, %68 : vector<2x32xf32>
    %85 = arith.mulf %80, %82 : vector<2x32xf32>
    %86 = arith.addf %84, %85 : vector<2x32xf32>
    %87 = math.tanh %86 : vector<2x32xf32>
    %88 = arith.mulf %83, %87 : vector<2x32xf32>
    %c8 = arith.constant 8 : index
    %c0_30 = arith.constant 0 : index
    %89 = vector.load %arg9[%c8, %c0_30] : memref<16x128xf32, #tpu.memory_space<vmem>>, vector<2x128xf32>
    %cst_31 = arith.constant dense<0.000000e+00> : vector<2x128xf32>
    %90 = tpu.matmul %88, %14, %cst_31 {dimension_numbers = #tpu.dot_dimension_numbers<[1], [1], [0], [0], [0, 0, 1, 0], [], []>} : vector<2x32xf32>, vector<128x32xf32>, vector<2x128xf32> -> vector<2x128xf32>
    %91 = arith.addf %90, %89 : vector<2x128xf32>
    %92 = arith.negf %91 : vector<2x128xf32>
    %93 = math.exp %92 : vector<2x128xf32>
    %cst_32 = arith.constant 1.000000e+00 : f32
    %94 = vector.broadcast %cst_32 : f32 to vector<2x128xf32>
    %95 = arith.addf %94, %93 : vector<2x128xf32>
    %96 = arith.divf %94, %95 : vector<2x128xf32>
    %97 = math.tanh %91 : vector<2x128xf32>
    %98 = vector.extract_strided_slice %96 {offsets = [0, 0], sizes = [2, 32], strides = [1, 1]} : vector<2x128xf32> to vector<2x32xf32>
    %99 = vector.extract_strided_slice %96 {offsets = [0, 32], sizes = [2, 32], strides = [1, 1]} : vector<2x128xf32> to vector<2x32xf32>
    %100 = vector.extract_strided_slice %97 {offsets = [0, 64], sizes = [2, 32], strides = [1, 1]} : vector<2x128xf32> to vector<2x32xf32>
    %101 = vector.extract_strided_slice %96 {offsets = [0, 96], sizes = [2, 32], strides = [1, 1]} : vector<2x128xf32> to vector<2x32xf32>
    %102 = arith.mulf %99, %86 : vector<2x32xf32>
    %103 = arith.mulf %98, %100 : vector<2x32xf32>
    %104 = arith.addf %102, %103 : vector<2x32xf32>
    %105 = math.tanh %104 : vector<2x32xf32>
    %106 = arith.mulf %101, %105 : vector<2x32xf32>
    %c10 = arith.constant 10 : index
    %c0_33 = arith.constant 0 : index
    %107 = vector.load %arg9[%c10, %c0_33] : memref<16x128xf32, #tpu.memory_space<vmem>>, vector<2x128xf32>
    %cst_34 = arith.constant dense<0.000000e+00> : vector<2x128xf32>
    %108 = tpu.matmul %106, %14, %cst_34 {dimension_numbers = #tpu.dot_dimension_numbers<[1], [1], [0], [0], [0, 0, 1, 0], [], []>} : vector<2x32xf32>, vector<128x32xf32>, vector<2x128xf32> -> vector<2x128xf32>
    %109 = arith.addf %108, %107 : vector<2x128xf32>
    %110 = arith.negf %109 : vector<2x128xf32>
    %111 = math.exp %110 : vector<2x128xf32>
    %cst_35 = arith.constant 1.000000e+00 : f32
    %112 = vector.broadcast %cst_35 : f32 to vector<2x128xf32>
    %113 = arith.addf %112, %111 : vector<2x128xf32>
    %114 = arith.divf %112, %113 : vector<2x128xf32>
    %115 = math.tanh %109 : vector<2x128xf32>
    %116 = vector.extract_strided_slice %114 {offsets = [0, 0], sizes = [2, 32], strides = [1, 1]} : vector<2x128xf32> to vector<2x32xf32>
    %117 = vector.extract_strided_slice %114 {offsets = [0, 32], sizes = [2, 32], strides = [1, 1]} : vector<2x128xf32> to vector<2x32xf32>
    %118 = vector.extract_strided_slice %115 {offsets = [0, 64], sizes = [2, 32], strides = [1, 1]} : vector<2x128xf32> to vector<2x32xf32>
    %119 = vector.extract_strided_slice %114 {offsets = [0, 96], sizes = [2, 32], strides = [1, 1]} : vector<2x128xf32> to vector<2x32xf32>
    %120 = arith.mulf %117, %104 : vector<2x32xf32>
    %121 = arith.mulf %116, %118 : vector<2x32xf32>
    %122 = arith.addf %120, %121 : vector<2x32xf32>
    %123 = math.tanh %122 : vector<2x32xf32>
    %124 = arith.mulf %119, %123 : vector<2x32xf32>
    %c12 = arith.constant 12 : index
    %c0_36 = arith.constant 0 : index
    %125 = vector.load %arg9[%c12, %c0_36] : memref<16x128xf32, #tpu.memory_space<vmem>>, vector<2x128xf32>
    %cst_37 = arith.constant dense<0.000000e+00> : vector<2x128xf32>
    %126 = tpu.matmul %124, %14, %cst_37 {dimension_numbers = #tpu.dot_dimension_numbers<[1], [1], [0], [0], [0, 0, 1, 0], [], []>} : vector<2x32xf32>, vector<128x32xf32>, vector<2x128xf32> -> vector<2x128xf32>
    %127 = arith.addf %126, %125 : vector<2x128xf32>
    %128 = arith.negf %127 : vector<2x128xf32>
    %129 = math.exp %128 : vector<2x128xf32>
    %cst_38 = arith.constant 1.000000e+00 : f32
    %130 = vector.broadcast %cst_38 : f32 to vector<2x128xf32>
    %131 = arith.addf %130, %129 : vector<2x128xf32>
    %132 = arith.divf %130, %131 : vector<2x128xf32>
    %133 = math.tanh %127 : vector<2x128xf32>
    %134 = vector.extract_strided_slice %132 {offsets = [0, 0], sizes = [2, 32], strides = [1, 1]} : vector<2x128xf32> to vector<2x32xf32>
    %135 = vector.extract_strided_slice %132 {offsets = [0, 32], sizes = [2, 32], strides = [1, 1]} : vector<2x128xf32> to vector<2x32xf32>
    %136 = vector.extract_strided_slice %133 {offsets = [0, 64], sizes = [2, 32], strides = [1, 1]} : vector<2x128xf32> to vector<2x32xf32>
    %137 = vector.extract_strided_slice %132 {offsets = [0, 96], sizes = [2, 32], strides = [1, 1]} : vector<2x128xf32> to vector<2x32xf32>
    %138 = arith.mulf %135, %122 : vector<2x32xf32>
    %139 = arith.mulf %134, %136 : vector<2x32xf32>
    %140 = arith.addf %138, %139 : vector<2x32xf32>
    %141 = math.tanh %140 : vector<2x32xf32>
    %142 = arith.mulf %137, %141 : vector<2x32xf32>
    %c14 = arith.constant 14 : index
    %c0_39 = arith.constant 0 : index
    %143 = vector.load %arg9[%c14, %c0_39] : memref<16x128xf32, #tpu.memory_space<vmem>>, vector<2x128xf32>
    %cst_40 = arith.constant dense<0.000000e+00> : vector<2x128xf32>
    %144 = tpu.matmul %142, %14, %cst_40 {dimension_numbers = #tpu.dot_dimension_numbers<[1], [1], [0], [0], [0, 0, 1, 0], [], []>} : vector<2x32xf32>, vector<128x32xf32>, vector<2x128xf32> -> vector<2x128xf32>
    %145 = arith.addf %144, %143 : vector<2x128xf32>
    %146 = arith.negf %145 : vector<2x128xf32>
    %147 = math.exp %146 : vector<2x128xf32>
    %cst_41 = arith.constant 1.000000e+00 : f32
    %148 = vector.broadcast %cst_41 : f32 to vector<2x128xf32>
    %149 = arith.addf %148, %147 : vector<2x128xf32>
    %150 = arith.divf %148, %149 : vector<2x128xf32>
    %151 = math.tanh %145 : vector<2x128xf32>
    %152 = vector.extract_strided_slice %150 {offsets = [0, 0], sizes = [2, 32], strides = [1, 1]} : vector<2x128xf32> to vector<2x32xf32>
    %153 = vector.extract_strided_slice %150 {offsets = [0, 32], sizes = [2, 32], strides = [1, 1]} : vector<2x128xf32> to vector<2x32xf32>
    %154 = vector.extract_strided_slice %151 {offsets = [0, 64], sizes = [2, 32], strides = [1, 1]} : vector<2x128xf32> to vector<2x32xf32>
    %155 = vector.extract_strided_slice %150 {offsets = [0, 96], sizes = [2, 32], strides = [1, 1]} : vector<2x128xf32> to vector<2x32xf32>
    %156 = arith.mulf %153, %140 : vector<2x32xf32>
    %157 = arith.mulf %152, %154 : vector<2x32xf32>
    %158 = arith.addf %156, %157 : vector<2x32xf32>
    %159 = math.tanh %158 : vector<2x32xf32>
    %160 = arith.mulf %155, %159 : vector<2x32xf32>
    %c0_42 = arith.constant 0 : index
    %c0_43 = arith.constant 0 : index
    %161 = vector.load %arg6[%c0_42, %c0_43] : memref<2x32xf32, #tpu.memory_space<vmem>>, vector<2x32xf32>
    %cst_44 = arith.constant dense<0.000000e+00> : vector<2x2xf32>
    %162 = tpu.matmul %160, %161, %cst_44 {dimension_numbers = #tpu.dot_dimension_numbers<[1], [1], [0], [0], [0, 0, 1, 0], [], []>} : vector<2x32xf32>, vector<2x32xf32>, vector<2x2xf32> -> vector<2x2xf32>
    %c0_45 = arith.constant 0 : index
    %c0_46 = arith.constant 0 : index
    %163 = vector.load %arg7[%c0_45, %c0_46] : memref<1x2xf32, #tpu.memory_space<vmem>>, vector<1x2xf32>
    %164 = vector.broadcast %163 : vector<1x2xf32> to vector<2x2xf32>
    %165 = arith.addf %162, %164 : vector<2x2xf32>
    %c0_47 = arith.constant 0 : index
    %c0_48 = arith.constant 0 : index
    %166 = vector.load %arg8[%c0_47, %c0_48] : memref<2x2xf32, #tpu.memory_space<vmem>>, vector<2x2xf32>
    tpu.vector_store %arg8[%c0_47, %c0_48], %165 {strides = array<i32>} : memref<2x2xf32, #tpu.memory_space<vmem>>, vector<2x2xf32>,
    return
  }
}

</mosaic_0001>

<llo_original>
// kernel: u_t_train_forward.1
$region0: #{u_t_train_forward.1}
  #allocation0 [shape = 'u32[]', space=smem, size = 0x4, offset = 0x4, fixed_abs, tag = 'smem constant byte address 0x4 - core index']
  #allocation1 [shape = 'u32[72,128]{1,0:T(1,128)}', space=vmem, size = 0x9000, scoped, tag = 'internal scratch']
  #allocation2 [shape = 'f32[16,128]{1,0:T(8,128)}', space=vmem, size = 0x2000, scoped, tag = 'scratch operand']
  %s0 = inlined_call_operand.vmem [shape: f32[16,256], index: 0, kind: input, shape index: {}]
  %s1 = inlined_call_operand.vmem [shape: f32[32,256], index: 1, kind: input, shape index: {}]
  %s2 = inlined_call_operand.vmem [shape: f32[1,32], index: 2, kind: input, shape index: {}]
  %s3 = inlined_call_operand.vmem [shape: f32[128,32], index: 3, kind: input, shape index: {}]
  %s4 = inlined_call_operand.vmem [shape: f32[128,32], index: 4, kind: input, shape index: {}]
  %s5 = inlined_call_operand.vmem [shape: f32[1,128], index: 5, kind: input, shape index: {}]
  %s6 = inlined_call_operand.vmem [shape: f32[2,32], index: 6, kind: input, shape index: {}]
  %s7 = inlined_call_operand.vmem [shape: f32[1,2], index: 7, kind: input, shape index: {}]
  %s8 = inlined_call_operand.hbm [shape: f32[2,2], index: 8, kind: output, shape index: {}]
  %s9 = sld [smem:[#allocation0]]
  $region42: #{u_t_train_forward.1} parent=0
    _
  %s11 = ssub.s32 1, %s9
  %s12 = scalar_select 0, %s11, %s9
  $region1: #{u_t_train_forward.1} parent=0
    #allocation3 [shape = 'u8[1024]{0}', space=vmem, size = 0x400, scoped, tag = 'output window, operand 0, single buffered']
    #allocation4 [shape = 's32[1]{0}', space=sflag, size = 0x4, scoped, tag = 'scoped memory for u_t_train_forward.1']
    %13 = vsyncpa [#allocation4], 0
    // Predicated region
    $region2: #{u_t_train_forward.1} parent=1 // pred_check
      _
    $region3: #{u_t_train_forward.1} parent=1 // pred_check_branch
      %15 = sbr.rel (0) target = $region5
    $region4: #{u_t_train_forward.1} parent=1 // pred_region
      _
    $region5: #{u_t_train_forward.1} parent=1 // pred_fallthru
      _
    // Predicated region
    $region6: #{u_t_train_forward.1} parent=1 // pred_check
      _
    $region7: #{u_t_train_forward.1} parent=1 // pred_check_branch
      %17 = sbr.rel (0) target = $region9
    $region8: #{u_t_train_forward.1} parent=1 // pred_region
      _
    $region9: #{u_t_train_forward.1} parent=1 // pred_fallthru
      _
    // Predicated region
    $region10: #{u_t_train_forward.1} parent=1 // pred_check
      _
    $region11: #{u_t_train_forward.1} parent=1 // pred_check_branch
      %19 = sbr.rel (0) target = $region13
    $region12: #{u_t_train_forward.1} parent=1 // pred_region
      _
    $region13: #{u_t_train_forward.1} parent=1 // pred_fallthru
      _
    // Predicated region
    $region14: #{u_t_train_forward.1} parent=1 // pred_check
      _
    $region15: #{u_t_train_forward.1} parent=1 // pred_check_branch
      %21 = sbr.rel (0) target = $region17
    $region16: #{u_t_train_forward.1} parent=1 // pred_region
      _
    $region17: #{u_t_train_forward.1} parent=1 // pred_fallthru
      _
    // Predicated region
    $region18: #{u_t_train_forward.1} parent=1 // pred_check
      _
    $region19: #{u_t_train_forward.1} parent=1 // pred_check_branch
      %23 = sbr.rel (0) target = $region21
    $region20: #{u_t_train_forward.1} parent=1 // pred_region
      _
    $region21: #{u_t_train_forward.1} parent=1 // pred_fallthru
      _
    // Predicated region
    $region22: #{u_t_train_forward.1} parent=1 // pred_check
      _
    $region23: #{u_t_train_forward.1} parent=1 // pred_check_branch
      %25 = sbr.rel (0) target = $region25
    $region24: #{u_t_train_forward.1} parent=1 // pred_region
      _
    $region25: #{u_t_train_forward.1} parent=1 // pred_fallthru
      _
    // Predicated region
    $region26: #{u_t_train_forward.1} parent=1 // pred_check
      _
    $region27: #{u_t_train_forward.1} parent=1 // pred_check_branch
      %27 = sbr.rel (0) target = $region29
    $region28: #{u_t_train_forward.1} parent=1 // pred_region
      _
    $region29: #{u_t_train_forward.1} parent=1 // pred_fallthru
      _
    // Predicated region
    $region30: #{u_t_train_forward.1} parent=1 // pred_check
      _
    $region31: #{u_t_train_forward.1} parent=1 // pred_check_branch
      %29 = sbr.rel (0) target = $region33
    $region32: #{u_t_train_forward.1} parent=1 // pred_region
      _
    $region33: #{u_t_train_forward.1} parent=1 // pred_fallthru
      _
    %v30 = vld [vmem:[%s0] sm:$0xff]
    %v31 = vld [vmem:[%s0 + $0x8] sm:$0xff]
    %v32 = vld [vmem:[%s0 + $0x10] sm:$0xff]
    %v33 = vld [vmem:[%s0 + $0x18] sm:$0xff]
    %v34 = vld [vmem:[%s1] sm:$0xff]
    %v35 = vld [vmem:[%s1 + $0x8] sm:$0xff]
    %v36 = vld [vmem:[%s1 + $0x10] sm:$0xff]
    %v37 = vld [vmem:[%s1 + $0x18] sm:$0xff]
    %v38 = vld [vmem:[%s1 + $0x20] sm:$0xff]
    %v39 = vld [vmem:[%s1 + $0x28] sm:$0xff]
    %v40 = vld [vmem:[%s1 + $0x30] sm:$0xff]
    %v41 = vld [vmem:[%s1 + $0x38] sm:$0xff]
    %v42 = vld [vmem:[%s2] sm:$0x1]
    %v44 = vperm.slane %v42, 0
    %46 = vmatpush.xpose.msra.mxu0 0.0
    %47 = vmatpush.xpose.msra.mxu0 0.0
    %48 = vmatpush.xpose.msra.mxu0 0.0
    %49 = vmatpush.xpose.msra.mxu0 0.0
    %50 = vmatpush.xpose.msra.mxu0 0.0
    %51 = vmatpush.xpose.msra.mxu0 0.0
    %52 = vmatpush.xpose.msra.mxu0 0.0
    %53 = vmatpush.xpose.msra.mxu0 0.0
    %54 = vmatpush.xpose.msra.mxu0 0.0
    %55 = vmatpush.xpose.msra.mxu0 0.0
    %56 = vmatpush.xpose.msra.mxu0 0.0
    %57 = vmatpush.xpose.msra.mxu0 0.0
    %58 = vmatpush.xpose.msra.mxu0 %v40
    %59 = vmatpush.xpose.msra.mxu0 %v38
    %60 = vmatpush.xpose.msra.mxu0 %v36
    %61 = vmatpush.xpose.msra.mxu0 %v34
    %62 = vmatmul.f32.gmra.mxu0 %v30
    %v63 = vpop.f32.mrf.mxu0
    %v64 = vadd.f32 %v44, %v63
    %65 = vmatmul.f32.gmra.mxu0 %v32
    %v66 = vpop.f32.mrf.mxu0
    %v67 = vadd.f32 %v44, %v66
    %68 = vdwg.mxu0
    %69 = vmatpush.xpose.msra.mxu0 0.0
    %70 = vmatpush.xpose.msra.mxu0 0.0
    %71 = vmatpush.xpose.msra.mxu0 0.0
    %72 = vmatpush.xpose.msra.mxu0 0.0
    %73 = vmatpush.xpose.msra.mxu0 0.0
    %74 = vmatpush.xpose.msra.mxu0 0.0
    %75 = vmatpush.xpose.msra.mxu0 0.0
    %76 = vmatpush.xpose.msra.mxu0 0.0
    %77 = vmatpush.xpose.msra.mxu0 0.0
    %78 = vmatpush.xpose.msra.mxu0 0.0
    %79 = vmatpush.xpose.msra.mxu0 0.0
    %80 = vmatpush.xpose.msra.mxu0 0.0
    %81 = vmatpush.xpose.msra.mxu0 %v41
    %82 = vmatpush.xpose.msra.mxu0 %v39
    %83 = vmatpush.xpose.msra.mxu0 %v37
    %84 = vmatpush.xpose.msra.mxu0 %v35
    %85 = vmatmul.f32.gmra.mxu0 %v31
    %v86 = vpop.f32.mrf.mxu0
    %v87 = vadd.f32 %v64, %v86
    %88 = vmatmul.f32.gmra.mxu0 %v33
    %v89 = vpop.f32.mrf.mxu0
    %v90 = vadd.f32 %v67, %v89
    %91 = vdwg.mxu0
    %v92 = vmax.f32 %v87, 0.0
    %v93 = vmax.f32 %v90, 0.0
    %v94 = vld [vmem:[%s3] sm:$0xff]
    %v95 = vld [vmem:[%s3 + $0x8] sm:$0xff]
    %v96 = vld [vmem:[%s3 + $0x10] sm:$0xff]
    %v97 = vld [vmem:[%s3 + $0x18] sm:$0xff]
    %v98 = vld [vmem:[%s3 + $0x20] sm:$0xff]
    %v99 = vld [vmem:[%s3 + $0x28] sm:$0xff]
    %v100 = vld [vmem:[%s3 + $0x30] sm:$0xff]
    %v101 = vld [vmem:[%s3 + $0x38] sm:$0xff]
    %v102 = vld [vmem:[%s3 + $0x40] sm:$0xff]
    %v103 = vld [vmem:[%s3 + $0x48] sm:$0xff]
    %v104 = vld [vmem:[%s3 + $0x50] sm:$0xff]
    %v105 = vld [vmem:[%s3 + $0x58] sm:$0xff]
    %v106 = vld [vmem:[%s3 + $0x60] sm:$0xff]
    %v107 = vld [vmem:[%s3 + $0x68] sm:$0xff]
    %v108 = vld [vmem:[%s3 + $0x70] sm:$0xff]
    %v109 = vld [vmem:[%s3 + $0x78] sm:$0xff]
    %v110 = vld [vmem:[%s5] sm:$0x1]
    %v112 = vperm.slane %v110, 0
    %vm114 = vcmask 261120
    %v116 = vsel %vm114, %v92, 0
    %v119 = vsel %vm114, %v93, 0
    %v122 = vsel %vm114, %v94, 0
    %v125 = vsel %vm114, %v95, 0
    %v128 = vsel %vm114, %v96, 0
    %v131 = vsel %vm114, %v97, 0
    %v134 = vsel %vm114, %v98, 0
    %v137 = vsel %vm114, %v99, 0
    %v140 = vsel %vm114, %v100, 0
    %v143 = vsel %vm114, %v101, 0
    %v146 = vsel %vm114, %v102, 0
    %v149 = vsel %vm114, %v103, 0
    %v152 = vsel %vm114, %v104, 0
    %v155 = vsel %vm114, %v105, 0
    %v158 = vsel %vm114, %v106, 0
    %v161 = vsel %vm114, %v107, 0
    %v164 = vsel %vm114, %v108, 0
    %v167 = vsel %vm114, %v109, 0
    %169 = vmatpush.xpose.msra.mxu0 %v167
    %170 = vmatpush.xpose.msra.mxu0 %v164
    %171 = vmatpush.xpose.msra.mxu0 %v161
    %172 = vmatpush.xpose.msra.mxu0 %v158
    %173 = vmatpush.xpose.msra.mxu0 %v155
    %174 = vmatpush.xpose.msra.mxu0 %v152
    %175 = vmatpush.xpose.msra.mxu0 %v149
    %176 = vmatpush.xpose.msra.mxu0 %v146
    %177 = vmatpush.xpose.msra.mxu0 %v143
    %178 = vmatpush.xpose.msra.mxu0 %v140
    %179 = vmatpush.xpose.msra.mxu0 %v137
    %180 = vmatpush.xpose.msra.mxu0 %v134
    %181 = vmatpush.xpose.msra.mxu0 %v131
    %182 = vmatpush.xpose.msra.mxu0 %v128
    %183 = vmatpush.xpose.msra.mxu0 %v125
    %184 = vmatpush.xpose.msra.mxu0 %v122
    %185 = vmatmul.f32.gmra.mxu0 %v116
    %v186 = vpop.f32.mrf.mxu0
    %v187 = vadd.f32 %v112, %v186
    %188 = vmatmul.f32.gmra.mxu0 %v119
    %v189 = vpop.f32.mrf.mxu0
    %v190 = vadd.f32 %v112, %v189
    %191 = vdwg.mxu0
    %192 = vst [vmem:[#allocation2] sm:$0xff] %v187
    %193 = vst [vmem:[#allocation2 + $0x8] sm:$0xff] %v190
    %v194 = vld [vmem:[%s4] sm:$0xff]
    %v195 = vld [vmem:[%s4 + $0x8] sm:$0xff]
    %v196 = vld [vmem:[%s4 + $0x10] sm:$0xff]
    %v197 = vld [vmem:[%s4 + $0x18] sm:$0xff]
    %v198 = vld [vmem:[%s4 + $0x20] sm:$0xff]
    %v199 = vld [vmem:[%s4 + $0x28] sm:$0xff]
    %v200 = vld [vmem:[%s4 + $0x30] sm:$0xff]
    %v201 = vld [vmem:[%s4 + $0x38] sm:$0xff]
    %v202 = vld [vmem:[%s4 + $0x40] sm:$0xff]
    %v203 = vld [vmem:[%s4 + $0x48] sm:$0xff]
    %v204 = vld [vmem:[%s4 + $0x50] sm:$0xff]
    %v205 = vld [vmem:[%s4 + $0x58] sm:$0xff]
    %v206 = vld [vmem:[%s4 + $0x60] sm:$0xff]
    %v207 = vld [vmem:[%s4 + $0x68] sm:$0xff]
    %v208 = vld [vmem:[%s4 + $0x70] sm:$0xff]
    %v209 = vld [vmem:[%s4 + $0x78] sm:$0xff]
    %v210 = vld [vmem:[#allocation2] sm:$0x3]
    %v212 = vsel %vm114, 0.0, 0
    %v215 = vsel %vm114, %v194, 0
    %v218 = vsel %vm114, %v195, 0
    %v221 = vsel %vm114, %v196, 0
    %v224 = vsel %vm114, %v197, 0
    %v227 = vsel %vm114, %v198, 0
    %v230 = vsel %vm114, %v199, 0
    %v233 = vsel %vm114, %v200, 0
    %v236 = vsel %vm114, %v201, 0
    %v239 = vsel %vm114, %v202, 0
    %v242 = vsel %vm114, %v203, 0
    %v245 = vsel %vm114, %v204, 0
    %v248 = vsel %vm114, %v205, 0
    %v251 = vsel %vm114, %v206, 0
    %v254 = vsel %vm114, %v207, 0
    %v257 = vsel %vm114, %v208, 0
    %v260 = vsel %vm114, %v209, 0
    %262 = vmatpush.xpose.msra.mxu0 %v260
    %263 = vmatpush.xpose.msra.mxu0 %v257
    %264 = vmatpush.xpose.msra.mxu0 %v254
    %265 = vmatpush.xpose.msra.mxu0 %v251
    %266 = vmatpush.xpose.msra.mxu0 %v248
    %267 = vmatpush.xpose.msra.mxu0 %v245
    %268 = vmatpush.xpose.msra.mxu0 %v242
    %269 = vmatpush.xpose.msra.mxu0 %v239
    %270 = vmatpush.xpose.msra.mxu0 %v236
    %271 = vmatpush.xpose.msra.mxu0 %v233
    %272 = vmatpush.xpose.msra.mxu0 %v230
    %273 = vmatpush.xpose.msra.mxu0 %v227
    %274 = vmatpush.xpose.msra.mxu0 %v224
    %275 = vmatpush.xpose.msra.mxu0 %v221
    %276 = vmatpush.xpose.msra.mxu0 %v218
    %277 = vmatpush.xpose.msra.mxu0 %v215
    %278 = vmatmul.f32.gmra.mxu0 %v212
    %v279 = vpop.f32.mrf.mxu0
    %v280 = vadd.f32 %v210, %v279
    %281 = vdwg.mxu0
    %v282 = vxor.u32 %v280, 2147483648
    %v283 = vmul.f32 %v282, 1.442695
    %v284 = vpow.pop %v283
    %v285 = vadd.f32 %v284, 1.0
    %v286 = vrcp.pop %v285
    %v287 = vmul.f32 %v285, %v286
    %v288 = vsub.f32 1.0, %v287
    %v289 = vmul.f32 %v286, %v288
    %v290 = vadd.f32 %v286, %v289
    %vm291 = vweird.f32 %v285
    %vm292 = vweird.f32 %v286
    %vm293 = vmor %vm291, %vm292
    %v294 = vsel %vm293, %v286, %v290
    %v295 = vand.u32 2147483647, %v285
    %vm296 = vcmp.eq.f32.partialorder %v295, 8.507059e+37
    %v297 = vand.u32 %v285, 2147483648
    %v298 = vor.u32 1.1754944e-38, %v297
    %v299 = vsel %vm296, %v298, %v294
    %v300 = vmul.f32 1.0, %v299
    %v301 = vtanh.pop %v280
    %v302 = vmul.f32 %v300, 0.0
    %304 = vrot.lane.b32.xlu0 %v301, 64
    %v305 = vpop.permute.xlu0 %304
    %v307 = vmul.f32 %v300, %v305
    %309 = vrot.lane.b32.xlu0 %v307, 32
    %v310 = vpop.permute.xlu0 %309
    %v312 = vadd.f32 %v302, %v310
    %v313 = vtanh.pop %v312
    %315 = vrot.lane.b32.xlu0 %v313, 64
    %v316 = vpop.permute.xlu0 %315
    %v318 = vmul.f32 %v300, %v316
    %v319 = vld [vmem:[#allocation2 + $0x2] sm:$0x3]
    %321 = vrot.lane.b32.xlu0 %v318, 32
    %v322 = vpop.permute.xlu0 %321
    %v323 = vsel %vm114, %v322, 0
    %325 = vmatpush.xpose.msra.mxu0 %v260
    %326 = vmatpush.xpose.msra.mxu0 %v257
    %327 = vmatpush.xpose.msra.mxu0 %v254
    %328 = vmatpush.xpose.msra.mxu0 %v251
    %329 = vmatpush.xpose.msra.mxu0 %v248
    %330 = vmatpush.xpose.msra.mxu0 %v245
    %331 = vmatpush.xpose.msra.mxu0 %v242
    %332 = vmatpush.xpose.msra.mxu0 %v239
    %333 = vmatpush.xpose.msra.mxu0 %v236
    %334 = vmatpush.xpose.msra.mxu0 %v233
    %335 = vmatpush.xpose.msra.mxu0 %v230
    %336 = vmatpush.xpose.msra.mxu0 %v227
    %337 = vmatpush.xpose.msra.mxu0 %v224
    %338 = vmatpush.xpose.msra.mxu0 %v221
    %339 = vmatpush.xpose.msra.mxu0 %v218
    %340 = vmatpush.xpose.msra.mxu0 %v215
    %341 = vmatmul.f32.gmra.mxu0 %v323
    %v342 = vpop.f32.mrf.mxu0
    %v343 = vadd.f32 %v319, %v342
    %344 = vdwg.mxu0
    %v345 = vxor.u32 %v343, 2147483648
    %v346 = vmul.f32 %v345, 1.442695
    %v347 = vpow.pop %v346
    %v348 = vadd.f32 %v347, 1.0
    %v349 = vrcp.pop %v348
    %v350 = vmul.f32 %v348, %v349
    %v351 = vsub.f32 1.0, %v350
    %v352 = vmul.f32 %v349, %v351
    %v353 = vadd.f32 %v349, %v352
    %vm354 = vweird.f32 %v348
    %vm355 = vweird.f32 %v349
    %vm356 = vmor %vm354, %vm355
    %v357 = vsel %vm356, %v349, %v353
    %v358 = vand.u32 2147483647, %v348
    %vm359 = vcmp.eq.f32.partialorder %v358, 8.507059e+37
    %v360 = vand.u32 %v348, 2147483648
    %v361 = vor.u32 1.1754944e-38, %v360
    %v362 = vsel %vm359, %v361, %v357
    %v363 = vmul.f32 1.0, %v362
    %v364 = vtanh.pop %v343
    %v365 = vmul.f32 %v363, %v312
    %367 = vrot.lane.b32.xlu0 %v364, 64
    %v368 = vpop.permute.xlu0 %367
    %v370 = vmul.f32 %v363, %v368
    %372 = vrot.lane.b32.xlu0 %v370, 32
    %v373 = vpop.permute.xlu0 %372
    %v375 = vadd.f32 %v365, %v373
    %v376 = vtanh.pop %v375
    %378 = vrot.lane.b32.xlu0 %v376, 64
    %v379 = vpop.permute.xlu0 %378
    %v381 = vmul.f32 %v363, %v379
    %v382 = vld [vmem:[#allocation2 + $0x4] sm:$0x3]
    %384 = vrot.lane.b32.xlu0 %v381, 32
    %v385 = vpop.permute.xlu0 %384
    %v386 = vsel %vm114, %v385, 0
    %388 = vmatpush.xpose.msra.mxu0 %v260
    %389 = vmatpush.xpose.msra.mxu0 %v257
    %390 = vmatpush.xpose.msra.mxu0 %v254
    %391 = vmatpush.xpose.msra.mxu0 %v251
    %392 = vmatpush.xpose.msra.mxu0 %v248
    %393 = vmatpush.xpose.msra.mxu0 %v245
    %394 = vmatpush.xpose.msra.mxu0 %v242
    %395 = vmatpush.xpose.msra.mxu0 %v239
    %396 = vmatpush.xpose.msra.mxu0 %v236
    %397 = vmatpush.xpose.msra.mxu0 %v233
    %398 = vmatpush.xpose.msra.mxu0 %v230
    %399 = vmatpush.xpose.msra.mxu0 %v227
    %400 = vmatpush.xpose.msra.mxu0 %v224
    %401 = vmatpush.xpose.msra.mxu0 %v221
    %402 = vmatpush.xpose.msra.mxu0 %v218
    %403 = vmatpush.xpose.msra.mxu0 %v215
    %404 = vmatmul.f32.gmra.mxu0 %v386
    %v405 = vpop.f32.mrf.mxu0
    %v406 = vadd.f32 %v382, %v405
    %407 = vdwg.mxu0
    %v408 = vxor.u32 %v406, 2147483648
    %v409 = vmul.f32 %v408, 1.442695
    %v410 = vpow.pop %v409
    %v411 = vadd.f32 %v410, 1.0
    %v412 = vrcp.pop %v411
    %v413 = vmul.f32 %v411, %v412
    %v414 = vsub.f32 1.0, %v413
    %v415 = vmul.f32 %v412, %v414
    %v416 = vadd.f32 %v412, %v415
    %vm417 = vweird.f32 %v411
    %vm418 = vweird.f32 %v412
    %vm419 = vmor %vm417, %vm418
    %v420 = vsel %vm419, %v412, %v416
    %v421 = vand.u32 2147483647, %v411
    %vm422 = vcmp.eq.f32.partialorder %v421, 8.507059e+37
    %v423 = vand.u32 %v411, 2147483648
    %v424 = vor.u32 1.1754944e-38, %v423
    %v425 = vsel %vm422, %v424, %v420
    %v426 = vmul.f32 1.0, %v425
    %v427 = vtanh.pop %v406
    %v428 = vmul.f32 %v426, %v375
    %430 = vrot.lane.b32.xlu0 %v427, 64
    %v431 = vpop.permute.xlu0 %430
    %v433 = vmul.f32 %v426, %v431
    %435 = vrot.lane.b32.xlu0 %v433, 32
    %v436 = vpop.permute.xlu0 %435
    %v438 = vadd.f32 %v428, %v436
    %v439 = vtanh.pop %v438
    %441 = vrot.lane.b32.xlu0 %v439, 64
    %v442 = vpop.permute.xlu0 %441
    %v444 = vmul.f32 %v426, %v442
    %v445 = vld [vmem:[#allocation2 + $0x6] sm:$0x3]
    %447 = vrot.lane.b32.xlu0 %v444, 32
    %v448 = vpop.permute.xlu0 %447
    %v449 = vsel %vm114, %v448, 0
    %451 = vmatpush.xpose.msra.mxu0 %v260
    %452 = vmatpush.xpose.msra.mxu0 %v257
    %453 = vmatpush.xpose.msra.mxu0 %v254
    %454 = vmatpush.xpose.msra.mxu0 %v251
    %455 = vmatpush.xpose.msra.mxu0 %v248
    %456 = vmatpush.xpose.msra.mxu0 %v245
    %457 = vmatpush.xpose.msra.mxu0 %v242
    %458 = vmatpush.xpose.msra.mxu0 %v239
    %459 = vmatpush.xpose.msra.mxu0 %v236
    %460 = vmatpush.xpose.msra.mxu0 %v233
    %461 = vmatpush.xpose.msra.mxu0 %v230
    %462 = vmatpush.xpose.msra.mxu0 %v227
    %463 = vmatpush.xpose.msra.mxu0 %v224
    %464 = vmatpush.xpose.msra.mxu0 %v221
    %465 = vmatpush.xpose.msra.mxu0 %v218
    %466 = vmatpush.xpose.msra.mxu0 %v215
    %467 = vmatmul.f32.gmra.mxu0 %v449
    %v468 = vpop.f32.mrf.mxu0
    %v469 = vadd.f32 %v445, %v468
    %470 = vdwg.mxu0
    %v471 = vxor.u32 %v469, 2147483648
    %v472 = vmul.f32 %v471, 1.442695
    %v473 = vpow.pop %v472
    %v474 = vadd.f32 %v473, 1.0
    %v475 = vrcp.pop %v474
    %v476 = vmul.f32 %v474, %v475
    %v477 = vsub.f32 1.0, %v476
    %v478 = vmul.f32 %v475, %v477
    %v479 = vadd.f32 %v475, %v478
    %vm480 = vweird.f32 %v474
    %vm481 = vweird.f32 %v475
    %vm482 = vmor %vm480, %vm481
    %v483 = vsel %vm482, %v475, %v479
    %v484 = vand.u32 2147483647, %v474
    %vm485 = vcmp.eq.f32.partialorder %v484, 8.507059e+37
    %v486 = vand.u32 %v474, 2147483648
    %v487 = vor.u32 1.1754944e-38, %v486
    %v488 = vsel %vm485, %v487, %v483
    %v489 = vmul.f32 1.0, %v488
    %v490 = vtanh.pop %v469
    %v491 = vmul.f32 %v489, %v438
    %493 = vrot.lane.b32.xlu0 %v490, 64
    %v494 = vpop.permute.xlu0 %493
    %v496 = vmul.f32 %v489, %v494
    %498 = vrot.lane.b32.xlu0 %v496, 32
    %v499 = vpop.permute.xlu0 %498
    %v501 = vadd.f32 %v491, %v499
    %v502 = vtanh.pop %v501
    %504 = vrot.lane.b32.xlu0 %v502, 64
    %v505 = vpop.permute.xlu0 %504
    %v507 = vmul.f32 %v489, %v505
    %v508 = vld [vmem:[#allocation2 + $0x8] sm:$0x3]
    %510 = vrot.lane.b32.xlu0 %v507, 32
    %v511 = vpop.permute.xlu0 %510
    %v512 = vsel %vm114, %v511, 0
    %514 = vmatpush.xpose.msra.mxu0 %v260
    %515 = vmatpush.xpose.msra.mxu0 %v257
    %516 = vmatpush.xpose.msra.mxu0 %v254
    %517 = vmatpush.xpose.msra.mxu0 %v251
    %518 = vmatpush.xpose.msra.mxu0 %v248
    %519 = vmatpush.xpose.msra.mxu0 %v245
    %520 = vmatpush.xpose.msra.mxu0 %v242
    %521 = vmatpush.xpose.msra.mxu0 %v239
    %522 = vmatpush.xpose.msra.mxu0 %v236
    %523 = vmatpush.xpose.msra.mxu0 %v233
    %524 = vmatpush.xpose.msra.mxu0 %v230
    %525 = vmatpush.xpose.msra.mxu0 %v227
    %526 = vmatpush.xpose.msra.mxu0 %v224
    %527 = vmatpush.xpose.msra.mxu0 %v221
    %528 = vmatpush.xpose.msra.mxu0 %v218
    %529 = vmatpush.xpose.msra.mxu0 %v215
    %530 = vmatmul.f32.gmra.mxu0 %v512
    %v531 = vpop.f32.mrf.mxu0
    %v532 = vadd.f32 %v508, %v531
    %533 = vdwg.mxu0
    %v534 = vxor.u32 %v532, 2147483648
    %v535 = vmul.f32 %v534, 1.442695
    %v536 = vpow.pop %v535
    %v537 = vadd.f32 %v536, 1.0
    %v538 = vrcp.pop %v537
    %v539 = vmul.f32 %v537, %v538
    %v540 = vsub.f32 1.0, %v539
    %v541 = vmul.f32 %v538, %v540
    %v542 = vadd.f32 %v538, %v541
    %vm543 = vweird.f32 %v537
    %vm544 = vweird.f32 %v538
    %vm545 = vmor %vm543, %vm544
    %v546 = vsel %vm545, %v538, %v542
    %v547 = vand.u32 2147483647, %v537
    %vm548 = vcmp.eq.f32.partialorder %v547, 8.507059e+37
    %v549 = vand.u32 %v537, 2147483648
    %v550 = vor.u32 1.1754944e-38, %v549
    %v551 = vsel %vm548, %v550, %v546
    %v552 = vmul.f32 1.0, %v551
    %v553 = vtanh.pop %v532
    %v554 = vmul.f32 %v552, %v501
    %556 = vrot.lane.b32.xlu0 %v553, 64
    %v557 = vpop.permute.xlu0 %556
    %v559 = vmul.f32 %v552, %v557
    %561 = vrot.lane.b32.xlu0 %v559, 32
    %v562 = vpop.permute.xlu0 %561
    %v564 = vadd.f32 %v554, %v562
    %v565 = vtanh.pop %v564
    %567 = vrot.lane.b32.xlu0 %v565, 64
    %v568 = vpop.permute.xlu0 %567
    %v570 = vmul.f32 %v552, %v568
    %v571 = vld [vmem:[#allocation2 + $0xa] sm:$0x3]
    %573 = vrot.lane.b32.xlu0 %v570, 32
    %v574 = vpop.permute.xlu0 %573
    %v575 = vsel %vm114, %v574, 0
    %577 = vmatpush.xpose.msra.mxu0 %v260
    %578 = vmatpush.xpose.msra.mxu0 %v257
    %579 = vmatpush.xpose.msra.mxu0 %v254
    %580 = vmatpush.xpose.msra.mxu0 %v251
    %581 = vmatpush.xpose.msra.mxu0 %v248
    %582 = vmatpush.xpose.msra.mxu0 %v245
    %583 = vmatpush.xpose.msra.mxu0 %v242
    %584 = vmatpush.xpose.msra.mxu0 %v239
    %585 = vmatpush.xpose.msra.mxu0 %v236
    %586 = vmatpush.xpose.msra.mxu0 %v233
    %587 = vmatpush.xpose.msra.mxu0 %v230
    %588 = vmatpush.xpose.msra.mxu0 %v227
    %589 = vmatpush.xpose.msra.mxu0 %v224
    %590 = vmatpush.xpose.msra.mxu0 %v221
    %591 = vmatpush.xpose.msra.mxu0 %v218
    %592 = vmatpush.xpose.msra.mxu0 %v215
    %593 = vmatmul.f32.gmra.mxu0 %v575
    %v594 = vpop.f32.mrf.mxu0
    %v595 = vadd.f32 %v571, %v594
    %596 = vdwg.mxu0
    %v597 = vxor.u32 %v595, 2147483648
    %v598 = vmul.f32 %v597, 1.442695
    %v599 = vpow.pop %v598
    %v600 = vadd.f32 %v599, 1.0
    %v601 = vrcp.pop %v600
    %v602 = vmul.f32 %v600, %v601
    %v603 = vsub.f32 1.0, %v602
    %v604 = vmul.f32 %v601, %v603
    %v605 = vadd.f32 %v601, %v604
    %vm606 = vweird.f32 %v600
    %vm607 = vweird.f32 %v601
    %vm608 = vmor %vm606, %vm607
    %v609 = vsel %vm608, %v601, %v605
    %v610 = vand.u32 2147483647, %v600
    %vm611 = vcmp.eq.f32.partialorder %v610, 8.507059e+37
    %v612 = vand.u32 %v600, 2147483648
    %v613 = vor.u32 1.1754944e-38, %v612
    %v614 = vsel %vm611, %v613, %v609
    %v615 = vmul.f32 1.0, %v614
    %v616 = vtanh.pop %v595
    %v617 = vmul.f32 %v615, %v564
    %619 = vrot.lane.b32.xlu0 %v616, 64
    %v620 = vpop.permute.xlu0 %619
    %v622 = vmul.f32 %v615, %v620
    %624 = vrot.lane.b32.xlu0 %v622, 32
    %v625 = vpop.permute.xlu0 %624
    %v627 = vadd.f32 %v617, %v625
    %v628 = vtanh.pop %v627
    %630 = vrot.lane.b32.xlu0 %v628, 64
    %v631 = vpop.permute.xlu0 %630
    %v633 = vmul.f32 %v615, %v631
    %v634 = vld [vmem:[#allocation2 + $0xc] sm:$0x3]
    %636 = vrot.lane.b32.xlu0 %v633, 32
    %v637 = vpop.permute.xlu0 %636
    %v638 = vsel %vm114, %v637, 0
    %640 = vmatpush.xpose.msra.mxu0 %v260
    %641 = vmatpush.xpose.msra.mxu0 %v257
    %642 = vmatpush.xpose.msra.mxu0 %v254
    %643 = vmatpush.xpose.msra.mxu0 %v251
    %644 = vmatpush.xpose.msra.mxu0 %v248
    %645 = vmatpush.xpose.msra.mxu0 %v245
    %646 = vmatpush.xpose.msra.mxu0 %v242
    %647 = vmatpush.xpose.msra.mxu0 %v239
    %648 = vmatpush.xpose.msra.mxu0 %v236
    %649 = vmatpush.xpose.msra.mxu0 %v233
    %650 = vmatpush.xpose.msra.mxu0 %v230
    %651 = vmatpush.xpose.msra.mxu0 %v227
    %652 = vmatpush.xpose.msra.mxu0 %v224
    %653 = vmatpush.xpose.msra.mxu0 %v221
    %654 = vmatpush.xpose.msra.mxu0 %v218
    %655 = vmatpush.xpose.msra.mxu0 %v215
    %656 = vmatmul.f32.gmra.mxu0 %v638
    %v657 = vpop.f32.mrf.mxu0
    %v658 = vadd.f32 %v634, %v657
    %659 = vdwg.mxu0
    %v660 = vxor.u32 %v658, 2147483648
    %v661 = vmul.f32 %v660, 1.442695
    %v662 = vpow.pop %v661
    %v663 = vadd.f32 %v662, 1.0
    %v664 = vrcp.pop %v663
    %v665 = vmul.f32 %v663, %v664
    %v666 = vsub.f32 1.0, %v665
    %v667 = vmul.f32 %v664, %v666
    %v668 = vadd.f32 %v664, %v667
    %vm669 = vweird.f32 %v663
    %vm670 = vweird.f32 %v664
    %vm671 = vmor %vm669, %vm670
    %v672 = vsel %vm671, %v664, %v668
    %v673 = vand.u32 2147483647, %v663
    %vm674 = vcmp.eq.f32.partialorder %v673, 8.507059e+37
    %v675 = vand.u32 %v663, 2147483648
    %v676 = vor.u32 1.1754944e-38, %v675
    %v677 = vsel %vm674, %v676, %v672
    %v678 = vmul.f32 1.0, %v677
    %v679 = vtanh.pop %v658
    %v680 = vmul.f32 %v678, %v627
    %682 = vrot.lane.b32.xlu0 %v679, 64
    %v683 = vpop.permute.xlu0 %682
    %v685 = vmul.f32 %v678, %v683
    %687 = vrot.lane.b32.xlu0 %v685, 32
    %v688 = vpop.permute.xlu0 %687
    %v690 = vadd.f32 %v680, %v688
    %v691 = vtanh.pop %v690
    %693 = vrot.lane.b32.xlu0 %v691, 64
    %v694 = vpop.permute.xlu0 %693
    %v696 = vmul.f32 %v678, %v694
    %v697 = vld [vmem:[#allocation2 + $0xe] sm:$0x3]
    %699 = vrot.lane.b32.xlu0 %v696, 32
    %v700 = vpop.permute.xlu0 %699
    %v701 = vsel %vm114, %v700, 0
    %703 = vmatpush.xpose.msra.mxu0 %v260
    %704 = vmatpush.xpose.msra.mxu0 %v257
    %705 = vmatpush.xpose.msra.mxu0 %v254
    %706 = vmatpush.xpose.msra.mxu0 %v251
    %707 = vmatpush.xpose.msra.mxu0 %v248
    %708 = vmatpush.xpose.msra.mxu0 %v245
    %709 = vmatpush.xpose.msra.mxu0 %v242
    %710 = vmatpush.xpose.msra.mxu0 %v239
    %711 = vmatpush.xpose.msra.mxu0 %v236
    %712 = vmatpush.xpose.msra.mxu0 %v233
    %713 = vmatpush.xpose.msra.mxu0 %v230
    %714 = vmatpush.xpose.msra.mxu0 %v227
    %715 = vmatpush.xpose.msra.mxu0 %v224
    %716 = vmatpush.xpose.msra.mxu0 %v221
    %717 = vmatpush.xpose.msra.mxu0 %v218
    %718 = vmatpush.xpose.msra.mxu0 %v215
    %719 = vmatmul.f32.gmra.mxu0 %v701
    %v720 = vpop.f32.mrf.mxu0
    %v721 = vadd.f32 %v697, %v720
    %722 = vdwg.mxu0
    %v723 = vxor.u32 %v721, 2147483648
    %v724 = vmul.f32 %v723, 1.442695
    %v725 = vpow.pop %v724
    %v726 = vadd.f32 %v725, 1.0
    %v727 = vrcp.pop %v726
    %v728 = vmul.f32 %v726, %v727
    %v729 = vsub.f32 1.0, %v728
    %v730 = vmul.f32 %v727, %v729
    %v731 = vadd.f32 %v727, %v730
    %vm732 = vweird.f32 %v726
    %vm733 = vweird.f32 %v727
    %vm734 = vmor %vm732, %vm733
    %v735 = vsel %vm734, %v727, %v731
    %v736 = vand.u32 2147483647, %v726
    %vm737 = vcmp.eq.f32.partialorder %v736, 8.507059e+37
    %v738 = vand.u32 %v726, 2147483648
    %v739 = vor.u32 1.1754944e-38, %v738
    %v740 = vsel %vm737, %v739, %v735
    %v741 = vmul.f32 1.0, %v740
    %v742 = vtanh.pop %v721
    %v743 = vmul.f32 %v741, %v690
    %745 = vrot.lane.b32.xlu0 %v742, 64
    %v746 = vpop.permute.xlu0 %745
    %v748 = vmul.f32 %v741, %v746
    %750 = vrot.lane.b32.xlu0 %v748, 32
    %v751 = vpop.permute.xlu0 %750
    %v753 = vadd.f32 %v743, %v751
    %v754 = vtanh.pop %v753
    %756 = vrot.lane.b32.xlu0 %v754, 64
    %v757 = vpop.permute.xlu0 %756
    %v759 = vmul.f32 %v741, %v757
    %v760 = vld [vmem:[%s6] sm:$0x3]
    %v761 = vld [vmem:[%s7] sm:$0x1]
    %v763 = vperm.slane %v761, 0
    %766 = vrot.lane.b32.xlu0 %v759, 32
    %v767 = vpop.permute.xlu0 %766
    %v768 = vsel %vm114, %v767, 0
    %v771 = vsel %vm114, %v760, 0
    %773 = vmatpush.xpose.msra.mxu0 0.0
    %774 = vmatpush.xpose.msra.mxu0 0.0
    %775 = vmatpush.xpose.msra.mxu0 0.0
    %776 = vmatpush.xpose.msra.mxu0 0.0
    %777 = vmatpush.xpose.msra.mxu0 0.0
    %778 = vmatpush.xpose.msra.mxu0 0.0
    %779 = vmatpush.xpose.msra.mxu0 0.0
    %780 = vmatpush.xpose.msra.mxu0 0.0
    %781 = vmatpush.xpose.msra.mxu0 0.0
    %782 = vmatpush.xpose.msra.mxu0 0.0
    %783 = vmatpush.xpose.msra.mxu0 0.0
    %784 = vmatpush.xpose.msra.mxu0 0.0
    %785 = vmatpush.xpose.msra.mxu0 0.0
    %786 = vmatpush.xpose.msra.mxu0 0.0
    %787 = vmatpush.xpose.msra.mxu0 0.0
    %788 = vmatpush.xpose.msra.mxu0 %v771
    %789 = vmatmul.f32.gmra.mxu0 %v768
    %v790 = vpop.f32.mrf.mxu0
    %v791 = vadd.f32 %v763, %v790
    %792 = vdwg.mxu0
    %vm793 = vcmask 9216
    %794 = vst.msk [vmem:[#allocation3] sm:$0x3] %vm793, %v791
    // Predicated region
    $region34: #{u_t_train_forward.1} parent=1 // pred_check
      _
    $region35: #{u_t_train_forward.1} parent=1 // pred_check_branch
      %796 = sbr.rel (0) target = $region37
    $region36: #{u_t_train_forward.1} parent=1 // pred_region
      %798 = vsyncadd [#allocation4], 0
      %s800 = sshll.u32 [#allocation3], 4
      %s801 = int_to_ptr.vmem [resolvable:$true] %s800
      %s802 = sshll.u32 %s8, 4
      %s803 = int_to_ptr.hbm [resolvable:$true] %s802
      %805 = dma.vmem_to_hbm [thread:$0]  %s801, 32, %s803, [#allocation4]
    $region37: #{u_t_train_forward.1} parent=1 // pred_fallthru
      _
    // Predicated region
    $region38: #{u_t_train_forward.1} parent=1 // pred_check
      _
    $region39: #{u_t_train_forward.1} parent=1 // pred_check_branch
      %807 = sbr.rel (0) target = $region41
    $region40: #{u_t_train_forward.1} parent=1 // pred_region
      %809 = dma.done [#allocation4], 32
    $region41: #{u_t_train_forward.1} parent=1 // pred_fallthru
      _
    %810 = vsyncpa [#allocation4], 1

</llo_original>
